<compile_context>
chip_gen: v7x
topology: tpu7x:2x2x1
jax: 0.10.0
libtpu: 0.0.40
codegen_flags: <defaults>
</compile_context>

<pallas_src>
import functools

import jax
import jax.numpy as jnp
from jax.experimental import pallas as pl
from jax.experimental.pallas import tpu as pltpu


# ----------------------------- parameter setup ------------------------------

def henaff_init(n: int, key) -> jnp.ndarray:
    """Henaff-style skew init: random angles on every other super-diagonal slot."""
    s = jax.random.uniform(key, (n // 2,), minval=-jnp.pi, maxval=jnp.pi,
                           dtype=jnp.float32)
    diag = jnp.zeros((n - 1,), dtype=jnp.float32).at[::2].set(s)
    return jnp.diag(diag, k=1)  # (n, n), strictly upper triangular


def build_orthogonal_kernel(input_size: int, output_size: int, key) -> jnp.ndarray:
    """Replicates Orthogonal2.__init__: B = expm(triu(W,1) - triu(W,1)^T)."""
    max_size = max(input_size, output_size)
    log_kernel = henaff_init(max_size, key)              # log_orthogonal_kernel
    a_upper = jnp.triu(log_kernel, k=1)
    A = a_upper - a_upper.T                              # skew-symmetric
    B = jax.scipy.linalg.expm(A)                         # orthogonal (max, max)
    return B
    # TODO(synk): the backward-pass expm_frechet gradient hook has no forward
    # equivalent and is intentionally not implemented (forward-only kernel).


# ------------------------------- Pallas kernel -------------------------------

def _round_up(v: int, m: int) -> int:
    return ((v + m - 1) // m) * m


def _matmul_kernel(x_ref, w_ref, o_ref):
    # One (tm, K) x (K, N) tile per grid step, f32 accumulation on the MXU.
    o_ref[...] = jnp.dot(
        x_ref[...], w_ref[...], preferred_element_type=jnp.float32
    ).astype(o_ref.dtype)


@functools.partial(jax.jit, static_argnums=(2, 3, 4, 5))
def orthogonal_forward(x: jnp.ndarray, w_full: jnp.ndarray,
                       input_size: int, output_size: int,
                       tile_m: int = 8192, use_bf16: bool = False) -> jnp.ndarray:
    """x: (..., input_size); returns (..., output_size).

    use_bf16=True casts the streamed inputs to bf16 (f32 MXU accumulation kept)
    — ~2x less HBM traffic on the dominant x stream, at bf16 input precision.
    """
    w = w_full[:input_size, :output_size]                # slice like the module
    batch_shape = x.shape[:-1]
    K = x.shape[-1]
    N = w.shape[1]
    out_dtype = x.dtype

    x2 = x.reshape(-1, K)
    M = x2.shape[0]

    if use_bf16:
        x2 = x2.astype(jnp.bfloat16)
        w = w.astype(jnp.bfloat16)

    # --- M tiling (no padding, ragged last tile handled by Pallas) -----------
    # Large tiles amortize the ~0.35 us per-step overhead; cap at ceil(M/2)
    # (rounded to 8 sublanes) so the "parallel" grid has >= 2 steps and both
    # v7x TensorCores are fed.  v5e/v6e (1 TC) are unaffected.
    tm = min(tile_m, _round_up(pl.cdiv(M, 2), 8))
    tm = max(tm, 8)
    grid_m = pl.cdiv(M, tm)

    # --- VMEM budget: only what the double-buffered tiles actually need ------
    in_item = jnp.dtype(x2.dtype).itemsize
    out_item = jnp.dtype(out_dtype).itemsize
    vmem_need = 2 * (tm * K + K * N) * in_item + 2 * tm * N * out_item
    vmem_limit = int(min(max(4 * vmem_need, 16 * 1024 * 1024), 48 * 1024 * 1024))

    cost = pl.CostEstimate(
        flops=2 * M * K * N,
        transcendentals=0,
        bytes_accessed=in_item * (M * K + K * N) + out_item * M * N,
    )

    out2 = pl.pallas_call(
        _matmul_kernel,
        out_shape=jax.ShapeDtypeStruct((M, N), out_dtype),
        grid=(grid_m,),
        in_specs=[
            pl.BlockSpec((tm, K), lambda i: (i, 0)),     # stream x tiles over M
            pl.BlockSpec((K, N), lambda i: (0, 0)),      # weight resident in VMEM
        ],
        out_specs=pl.BlockSpec((tm, N), lambda i: (i, 0)),
        compiler_params=pltpu.CompilerParams(
            dimension_semantics=("parallel",),            # megacore split on v7x
            vmem_limit_bytes=vmem_limit,
        ),
        cost_estimate=cost,
    )(x2, w)

    return out2.reshape(*batch_shape, N)


# ----------------------------------- main ------------------------------------

if __name__ == "__main__":
    input_size = 32
    output_size = 16

    key = jax.random.PRNGKey(0)
    k_param, k_x = jax.random.split(key)

    # Deterministic parameter (same construction as the module's __init__)
    B = build_orthogonal_kernel(input_size, output_size, k_param)

    # Small example input: (2, 4, 8, input_size); matmul broadcasts over leading dims.
    x = jax.random.normal(k_x, (2, 4, 8, input_size), dtype=jnp.float32)

    out = orthogonal_forward(x, B, input_size, output_size)
    out = jax.block_until_ready(out)

    # Reference check against plain JAX (default f32 path matches exactly).
    ref = x @ B[:input_size, :output_size]
    assert out.shape == (2, 4, 8, output_size)
    assert jnp.allclose(out, ref, atol=1e-5, rtol=1e-5)

    print("KERNEL_OK")
</pallas_src>

<mosaic_0001>
module attributes {stable_mosaic.version = 11 : i64} {
  func.func @_matmul_kernel(%arg0: i32, %arg1: memref<32x32xf32, #tpu.memory_space<vmem>>, %arg2: memref<32x16xf32, #tpu.memory_space<vmem>>, %arg3: memref<32x16xf32, #tpu.memory_space<vmem>>) attributes {dimension_semantics = [#tpu.dimension_semantics<parallel>], iteration_bounds = array<i64: 2>, scalar_prefetch = 0 : i64, scratch_operands = 0 : i64, tpu.core_type = #tpu.core_type<tc>, window_params = [{transform_indices = @transform_0, window_bounds = array<i64: 32, 32>}, {pipeline_mode = #tpu.pipeline_mode<synchronous>, transform_indices = @transform_1, window_bounds = array<i64: 32, 16>}, {transform_indices = @transform_2, window_bounds = array<i64: 32, 16>}]} {
    %c0 = arith.constant 0 : index
    %c0_0 = arith.constant 0 : index
    %0 = vector.load %arg1[%c0, %c0_0] : memref<32x32xf32, #tpu.memory_space<vmem>>, vector<32x32xf32>
    %c0_1 = arith.constant 0 : index
    %c0_2 = arith.constant 0 : index
    %1 = vector.load %arg2[%c0_1, %c0_2] : memref<32x16xf32, #tpu.memory_space<vmem>>, vector<32x16xf32>
    %cst = arith.constant dense<0.000000e+00> : vector<32x16xf32>
    %2 = tpu.matmul %0, %1, %cst {dimension_numbers = #tpu.dot_dimension_numbers<[1], [0], [0], [1], [0, 0, 1, 1], [], []>} : vector<32x32xf32>, vector<32x16xf32>, vector<32x16xf32> -> vector<32x16xf32>
    %c0_3 = arith.constant 0 : index
    %c0_4 = arith.constant 0 : index
    %3 = vector.load %arg3[%c0_3, %c0_4] : memref<32x16xf32, #tpu.memory_space<vmem>>, vector<32x16xf32>
    tpu.vector_store %arg3[%c0_3, %c0_4], %2 {strides = array<i32>} : memref<32x16xf32, #tpu.memory_space<vmem>>, vector<32x16xf32>,
    return
  }
  func.func @transform_0(%arg0: i32) -> (i32, i32) {
    %c0_i32 = arith.constant 0 : i32
    %c0_i32_0 = arith.constant 0 : i32
    return %arg0, %c0_i32 : i32, i32
  }
  func.func @transform_1(%arg0: i32) -> (i32, i32) {
    %c0_i32 = arith.constant 0 : i32
    %c0_i32_0 = arith.constant 0 : i32
    %c0_i32_1 = arith.constant 0 : i32
    return %c0_i32, %c0_i32_0 : i32, i32
  }
  func.func @transform_2(%arg0: i32) -> (i32, i32) {
    %c0_i32 = arith.constant 0 : i32
    %c0_i32_0 = arith.constant 0 : i32
    return %arg0, %c0_i32 : i32, i32
  }
}

</mosaic_0001>

<llo_original>
// kernel: orthogonal_forward.1
$region0: #{orthogonal_forward.1}
  #allocation0 [shape = 'u32[]', space=smem, size = 0x4, offset = 0x4, fixed_abs, tag = 'smem constant byte address 0x4 - core index']
  #allocation1 [shape = 'u32[144,128]{1,0:T(1,128)}', space=vmem, size = 0x12000, scoped, tag = 'internal scratch']
  %s0 = inlined_call_operand.hbm [shape: f32[64,32], index: 0, kind: input, shape index: {}]
  %s1 = inlined_call_operand.hbm [shape: f32[32,16], index: 1, kind: input, shape index: {}]
  %s2 = inlined_call_operand.hbm [shape: f32[64,16], index: 2, kind: output, shape index: {}]
  %s3 = sld [smem:[#allocation0]]
  $region49: #{orthogonal_forward.1} parent=0
    _
  %s5 = ssub.s32 1, %s3
  %s6 = scalar_select 0, %s5, %s3
  $region1: #{orthogonal_forward.1} parent=0
    #allocation2 [shape = 'u8[32768]{0}', space=vmem, size = 0x8000, scoped, tag = 'input window, operand 0']
    #allocation3 [shape = 's32[2]{0}', space=sflag, size = 0x8, scoped, tag = 'scoped memory for orthogonal_forward.1']
    #allocation4 [shape = 's32[2]{0}', space=sflag, size = 0x8, scoped, tag = 'scoped memory for orthogonal_forward.1']
    #allocation5 [shape = 'u8[16384]{0}', space=vmem, size = 0x4000, scoped, tag = 'input window, operand 1, single buffered']
    #allocation6 [shape = 's32[1]{0}', space=sflag, size = 0x4, scoped, tag = 'scoped memory for orthogonal_forward.1']
    #allocation7 [shape = 'u8[32768]{0}', space=vmem, size = 0x8000, scoped, tag = 'output window, operand 0']
    %7 = vsyncpa [#allocation3], 0
    %s8 = scalar_lea.sflag [#allocation3], 1
    %9 = vsyncpa %s8, 0
    %10 = vsyncpa [#allocation6], 0
    %11 = vsyncpa [#allocation4], 0
    %s12 = scalar_lea.sflag [#allocation4], 1
    %13 = vsyncpa %s12, 0
    loop: start=0, step=1, limit=4
    $region2: #{orthogonal_forward.1} parent=1 // loop_pre_header
      _
    $region3: #{orthogonal_forward.1} parent=1 // loop_header
      %s15 = sphi 0, %s19
      %p16 = scmp.ge.s32.totalorder %s15, 4
      %s25 = sphi 0, %s27
      %s28 = sphi 0, %s25
      %s29 = sphi 0, %s28
      %s45 = sphi 0, %s29
      %s49 = sphi 0, %s49
      %s51 = sphi 0, %s49
      %s52 = sphi 0, %s51
      %s66 = sphi 0, %s52
      %s72 = sphi 0, %s74
      %s75 = sphi 0, %s72
      %s76 = sphi 0, %s75
      %s92 = sphi 0, %s76
    $region4: #{orthogonal_forward.1} parent=1 // loop_header_branch
      %18 = sbr.rel (%p16) target = $region8
    $region5: #{orthogonal_forward.1} parent=1 // loop_body
      %s20 = ssub.s32 %s15, 1
      %s21 = ssub.s32 %s15, 2
      %s22 = sadd.s32 %s15, 1
      %s23 = ssub.s32 %s15, %s22
      %p24 = scmp.eq.s32.totalorder %s23, 0
      %s26 = sadd.s32 %s25, 1
      %s27 = scalar_select %p24, %s25, %s26
      %p30 = pneg %p24
      %p31 = scmp.eq.s32.totalorder %s15, 1
      %p32 = por %p30, %p31
      %p33 = scmp.ne.s32.totalorder %s25, %s28
      %p34 = scmp.eq.s32.totalorder %s15, 0
      %p35 = por %p33, %p34
      %p36 = scmp.ne.s32.totalorder %s25, %s28
      %p37 = scmp.eq.s32.totalorder %s20, 1
      %p38 = por %p36, %p37
      %p39 = scmp.ne.s32.totalorder %s28, %s29
      %p40 = scmp.eq.s32.totalorder %s20, 0
      %p41 = por %p39, %p40
      %p42 = scmp.ne.s32.totalorder %s28, %s29
      %p43 = scmp.eq.s32.totalorder %s21, 1
      %p44 = por %p42, %p43
      %p46 = scmp.ne.s32.totalorder %s29, %s45
      %p47 = scmp.eq.s32.totalorder %s21, 0
      %p48 = por %p46, %p47
      %s50 = sadd.s32 %s49, 1
      %p53 = scmp.eq.s32.totalorder %s15, 1
      %p54 = scmp.ne.s32.totalorder %s49, %s51
      %p55 = scmp.eq.s32.totalorder %s15, 0
      %p56 = por %p54, %p55
      %p57 = scmp.ne.s32.totalorder %s49, %s51
      %p58 = scmp.eq.s32.totalorder %s20, 1
      %p59 = por %p57, %p58
      %p60 = scmp.ne.s32.totalorder %s51, %s52
      %p61 = scmp.eq.s32.totalorder %s20, 0
      %p62 = por %p60, %p61
      %p63 = scmp.ne.s32.totalorder %s51, %s52
      %p64 = scmp.eq.s32.totalorder %s21, 1
      %p65 = por %p63, %p64
      %p67 = scmp.ne.s32.totalorder %s52, %s66
      %p68 = scmp.eq.s32.totalorder %s21, 0
      %p69 = por %p67, %p68
      %s70 = ssub.s32 %s15, %s22
      %p71 = scmp.eq.s32.totalorder %s70, 0
      %s73 = sadd.s32 %s72, 1
      %s74 = scalar_select %p71, %s72, %s73
      %p77 = pneg %p71
      %p78 = scmp.eq.s32.totalorder %s15, 1
      %p79 = por %p77, %p78
      %p80 = scmp.ne.s32.totalorder %s72, %s75
      %p81 = scmp.eq.s32.totalorder %s15, 0
      %p82 = por %p80, %p81
      %p83 = scmp.ne.s32.totalorder %s72, %s75
      %p84 = scmp.eq.s32.totalorder %s20, 1
      %p85 = por %p83, %p84
      %p86 = scmp.ne.s32.totalorder %s75, %s76
      %p87 = scmp.eq.s32.totalorder %s20, 0
      %p88 = por %p86, %p87
      %p89 = scmp.ne.s32.totalorder %s75, %s76
      %p90 = scmp.eq.s32.totalorder %s21, 1
      %p91 = por %p89, %p90
      %p93 = scmp.ne.s32.totalorder %s76, %s92
      %p94 = scmp.eq.s32.totalorder %s21, 0
      %p95 = por %p93, %p94
      %p96 = scmp.le.s32.totalorder 1, %s15
      %p97 = scmp.lt.s32.totalorder %s15, 3
      %p98 = pnand %p96, %p97
      %p99 = pneg %p98
      // Predicated region
      $region9: #{orthogonal_forward.1} parent=5 // pred_check
        _
      $region10: #{orthogonal_forward.1} parent=5 // pred_check_branch
        %101 = sbr.rel (%p98) target = $region12
      $region11: #{orthogonal_forward.1} parent=5 // pred_region
        %s102 = ssub.s32 %s15, 1
        // Predicated region
        $region13: #{orthogonal_forward.1} parent=11 // pred_check
          %p103 = pneg %p62
        $region14: #{orthogonal_forward.1} parent=11 // pred_check_branch
          %105 = sbr.rel (%p103) target = $region16
        $region15: #{orthogonal_forward.1} parent=11 // pred_region
          %s107 = ssub.s32 512, 512
          %108 = vsyncadd [#allocation6], %s107
          %s109 = sshll.u32 [#allocation5], 4
          %s110 = int_to_ptr.vmem [resolvable:$true] %s109
          %115 = dma.hbm_to_vmem [thread:$0]  %s1, 512, %s110, [#allocation6], 128, 128, 8
        $region16: #{orthogonal_forward.1} parent=11 // pred_fallthru
          _
      $region12: #{orthogonal_forward.1} parent=5 // pred_fallthru
        _
      %p116 = scmp.lt.s32.totalorder %s15, 2
      // Predicated region
      $region17: #{orthogonal_forward.1} parent=5 // pred_check
        %p117 = pneg %p116
      $region18: #{orthogonal_forward.1} parent=5 // pred_check_branch
        %119 = sbr.rel (%p117) target = $region20
      $region19: #{orthogonal_forward.1} parent=5 // pred_region
        // Predicated region
        $region21: #{orthogonal_forward.1} parent=19 // pred_check
          %p120 = pneg %p35
        $region22: #{orthogonal_forward.1} parent=19 // pred_check_branch
          %122 = sbr.rel (%p120) target = $region24
        $region23: #{orthogonal_forward.1} parent=19 // pred_region
          %s123 = sand.u32 %s25, 1
          %s124 = scalar_lea.sflag [#allocation3], %s123
          %s125 = sand.u32 %s25, 1
          %s126 = smul.addr %s125, 32
          %s127 = scalar_lea.vmem [#allocation2], %s126
          %s128 = smul.u32 4, %s15
          %s130 = ssub.s32 512, 512
          %131 = vsyncadd %s124, %s130
          %s132 = smul.addr %s128, 128
          %s133 = scalar_lea.hbm %s0, %s132
          %s134 = sshll.u32 %s127, 4
          %s135 = int_to_ptr.vmem [resolvable:$true] %s134
          %140 = dma.hbm_to_vmem [thread:$0]  %s133, 512, %s135, %s124, 128, 128, 8
        $region24: #{orthogonal_forward.1} parent=19 // pred_fallthru
          _
      $region20: #{orthogonal_forward.1} parent=5 // pred_fallthru
        _
      %p141 = scmp.le.s32.totalorder 1, %s15
      %p142 = scmp.lt.s32.totalorder %s15, 3
      %p143 = pnand %p141, %p142
      %p144 = pneg %p143
      // Predicated region
      $region25: #{orthogonal_forward.1} parent=5 // pred_check
        _
      $region26: #{orthogonal_forward.1} parent=5 // pred_check_branch
        %146 = sbr.rel (%p143) target = $region28
      $region27: #{orthogonal_forward.1} parent=5 // pred_region
        %s147 = ssub.s32 %s15, 1
        %s148 = sand.u32 %s28, 1
        %s149 = scalar_lea.sflag [#allocation3], %s148
        %s150 = sand.u32 %s28, 1
        %s151 = smul.addr %s150, 32
        %s152 = scalar_lea.vmem [#allocation2], %s151
        // Predicated region
        $region29: #{orthogonal_forward.1} parent=27 // pred_check
          %p153 = pneg %p41
        $region30: #{orthogonal_forward.1} parent=27 // pred_check_branch
          %155 = sbr.rel (%p153) target = $region32
        $region31: #{orthogonal_forward.1} parent=27 // pred_region
          %156 = dma.done %s149, 512
        $region32: #{orthogonal_forward.1} parent=27 // pred_fallthru
          _
        // Predicated region
        $region33: #{orthogonal_forward.1} parent=27 // pred_check
          %p157 = pneg %p62
        $region34: #{orthogonal_forward.1} parent=27 // pred_check_branch
          %159 = sbr.rel (%p157) target = $region36
        $region35: #{orthogonal_forward.1} parent=27 // pred_region
          %160 = dma.done [#allocation6], 512
        $region36: #{orthogonal_forward.1} parent=27 // pred_fallthru
          _
        %s161 = sand.u32 %s28, 1
        %s162 = scalar_lea.sflag [#allocation3], %s161
        %s163 = sand.u32 %s28, 1
        %s164 = smul.addr %s163, 32
        %s165 = scalar_lea.vmem [#allocation2], %s164
        %p166 = pneg %p41
        %p167 = pneg %p38
        %p168 = pneg %p62
        %p169 = pneg %p59
        %p170 = pneg %p88
        %p171 = pneg %p85
        %s172 = sand.u32 %s75, 1
        %s173 = scalar_lea.sflag [#allocation4], %s172
        %s174 = sand.u32 %s75, 1
        %s175 = smul.addr %s174, 32
        %s176 = scalar_lea.vmem [#allocation7], %s175
        %s177 = smul.u32 4, %s20
        %s178 = smul.u32 4, %s20
        %v179 = vld [vmem:[%s152] sm:$0xff]
        %v180 = vld [vmem:[%s152 + $0x8] sm:$0xff]
        %v181 = vld [vmem:[%s152 + $0x10] sm:$0xff]
        %v182 = vld [vmem:[%s152 + $0x18] sm:$0xff]
        %v183 = vld [vmem:[#allocation5] sm:$0xff]
        %v184 = vld [vmem:[#allocation5 + $0x8] sm:$0xff]
        %v185 = vld [vmem:[#allocation5 + $0x10] sm:$0xff]
        %v186 = vld [vmem:[#allocation5 + $0x18] sm:$0xff]
        %vm187 = vcmask 261120
        %v189 = vsel %vm187, %v179, 0
        %v192 = vsel %vm187, %v180, 0
        %v195 = vsel %vm187, %v181, 0
        %v198 = vsel %vm187, %v182, 0
        %200 = vmatprep.subr.mxu0 0.0
        %201 = vmatpush1.msra.mxu0 %v183
        %202 = vmatprep.subr.mxu0 0.0
        %203 = vmatpush1.msra.mxu0 %v184
        %204 = vmatprep.subr.mxu0 0.0
        %205 = vmatpush1.msra.mxu0 %v185
        %206 = vmatprep.subr.mxu0 0.0
        %207 = vmatpush1.msra.mxu0 %v186
        %208 = vmatprep.subr.mxu0 0.0
        %209 = vmatpush1.msra.mxu0 0.0
        %210 = vmatprep.subr.mxu0 0.0
        %211 = vmatpush1.msra.mxu0 0.0
        %212 = vmatprep.subr.mxu0 0.0
        %213 = vmatpush1.msra.mxu0 0.0
        %214 = vmatprep.subr.mxu0 0.0
        %215 = vmatpush1.msra.mxu0 0.0
        %216 = vmatprep.subr.mxu0 0.0
        %217 = vmatpush1.msra.mxu0 0.0
        %218 = vmatprep.subr.mxu0 0.0
        %219 = vmatpush1.msra.mxu0 0.0
        %220 = vmatprep.subr.mxu0 0.0
        %221 = vmatpush1.msra.mxu0 0.0
        %222 = vmatprep.subr.mxu0 0.0
        %223 = vmatpush1.msra.mxu0 0.0
        %224 = vmatprep.subr.mxu0 0.0
        %225 = vmatpush1.msra.mxu0 0.0
        %226 = vmatprep.subr.mxu0 0.0
        %227 = vmatpush1.msra.mxu0 0.0
        %228 = vmatprep.subr.mxu0 0.0
        %229 = vmatpush1.msra.mxu0 0.0
        %230 = vmatprep.subr.mxu0 0.0
        %231 = vmatpush1.msra.mxu0 0.0
        %232 = vmatprep.subr.mxu0 0.0
        %233 = vmatpush1.msra.mxu0 0.0
        %234 = vmatprep.subr.mxu0 0.0
        %235 = vmatpush1.msra.mxu0 0.0
        %236 = vmatprep.subr.mxu0 0.0
        %237 = vmatpush1.msra.mxu0 0.0
        %238 = vmatprep.subr.mxu0 0.0
        %239 = vmatpush1.msra.mxu0 0.0
        %240 = vmatprep.subr.mxu0 0.0
        %241 = vmatpush1.msra.mxu0 0.0
        %242 = vmatprep.subr.mxu0 0.0
        %243 = vmatpush1.msra.mxu0 0.0
        %244 = vmatprep.subr.mxu0 0.0
        %245 = vmatpush1.msra.mxu0 0.0
        %246 = vmatprep.subr.mxu0 0.0
        %247 = vmatpush1.msra.mxu0 0.0
        %248 = vmatprep.subr.mxu0 0.0
        %249 = vmatpush1.msra.mxu0 0.0
        %250 = vmatprep.subr.mxu0 0.0
        %251 = vmatpush1.msra.mxu0 0.0
        %252 = vmatprep.subr.mxu0 0.0
        %253 = vmatpush1.msra.mxu0 0.0
        %254 = vmatprep.subr.mxu0 0.0
        %255 = vmatpush1.msra.mxu0 0.0
        %256 = vmatprep.subr.mxu0 0.0
        %257 = vmatpush1.msra.mxu0 0.0
        %258 = vmatprep.subr.mxu0 0.0
        %259 = vmatpush1.msra.mxu0 0.0
        %260 = vmatprep.subr.mxu0 0.0
        %261 = vmatpush1.msra.mxu0 0.0
        %262 = vmatprep.subr.mxu0 0.0
        %263 = vmatpush1.msra.mxu0 0.0
        %264 = vmatprep.mubr.f32.mxu0 0.0
        %265 = vmatmul.mubr.f32.gmra.mrb[0].mxu0 %v189
        %v266 = vpop.f32.mrb[0].mxu0
        %v267 = vadd.f32 0.0, %v266
        %v268 = vpop.f32.mrb[0].mxu0
        %269 = vmatprep.mubr.f32.mxu0 0.0
        %270 = vmatmul.mubr.f32.gmra.mrb[0].mxu0 %v192
        %v271 = vpop.f32.mrb[0].mxu0
        %v272 = vadd.f32 0.0, %v271
        %v273 = vpop.f32.mrb[0].mxu0
        %274 = vmatprep.mubr.f32.mxu0 0.0
        %275 = vmatmul.mubr.f32.gmra.mrb[0].mxu0 %v195
        %v276 = vpop.f32.mrb[0].mxu0
        %v277 = vadd.f32 0.0, %v276
        %v278 = vpop.f32.mrb[0].mxu0
        %279 = vmatprep.mubr.f32.mxu0 0.0
        %280 = vmatmul.mubr.f32.gmra.mrb[0].mxu0 %v198
        %v281 = vpop.f32.mrb[0].mxu0
        %v282 = vadd.f32 0.0, %v281
        %v283 = vpop.f32.mrb[0].mxu0
        %284 = vdwg.mxu0
        %vm285 = vcmask 130048
        %286 = vst.msk [vmem:[%s176] sm:$0xff] %vm285, %v267
        %287 = vst.msk [vmem:[%s176 + $0x8] sm:$0xff] %vm285, %v272
        %288 = vst.msk [vmem:[%s176 + $0x10] sm:$0xff] %vm285, %v277
        %289 = vst.msk [vmem:[%s176 + $0x18] sm:$0xff] %vm285, %v282
        %s290 = sand.u32 %s75, 1
        %s291 = scalar_lea.sflag [#allocation4], %s290
        %s292 = sand.u32 %s75, 1
        %s293 = smul.addr %s292, 32
        %s294 = scalar_lea.vmem [#allocation7], %s293
        // Predicated region
        $region37: #{orthogonal_forward.1} parent=27 // pred_check
          %p295 = pneg %p85
        $region38: #{orthogonal_forward.1} parent=27 // pred_check_branch
          %297 = sbr.rel (%p295) target = $region40
        $region39: #{orthogonal_forward.1} parent=27 // pred_region
          %s298 = smul.u32 4, %s20
          %s300 = ssub.s32 512, 512
          %301 = vsyncadd %s291, %s300
          %s302 = smul.addr %s298, 128
          %s303 = scalar_lea.hbm %s2, %s302
          %s304 = sshll.u32 %s294, 4
          %s305 = int_to_ptr.vmem [resolvable:$true] %s304
          %310 = dma.vmem_to_hbm [thread:$0]  %s305, 512, %s303, %s291, 128, 128, 8
        $region40: #{orthogonal_forward.1} parent=27 // pred_fallthru
          _
      $region28: #{orthogonal_forward.1} parent=5 // pred_fallthru
        _
      %p311 = scmp.le.s32.totalorder 2, %s15
      // Predicated region
      $region41: #{orthogonal_forward.1} parent=5 // pred_check
        %p312 = pneg %p311
      $region42: #{orthogonal_forward.1} parent=5 // pred_check_branch
        %314 = sbr.rel (%p312) target = $region44
      $region43: #{orthogonal_forward.1} parent=5 // pred_region
        %s315 = ssub.s32 %s15, 2
        // Predicated region
        $region45: #{orthogonal_forward.1} parent=43 // pred_check
          %p316 = pneg %p91
        $region46: #{orthogonal_forward.1} parent=43 // pred_check_branch
          %318 = sbr.rel (%p316) target = $region48
        $region47: #{orthogonal_forward.1} parent=43 // pred_region
          %s319 = sand.u32 %s76, 1
          %s320 = scalar_lea.sflag [#allocation4], %s319
          %s321 = sand.u32 %s76, 1
          %s322 = smul.addr %s321, 32
          %s323 = scalar_lea.vmem [#allocation7], %s322
          %324 = dma.done %s320, 512
        $region48: #{orthogonal_forward.1} parent=43 // pred_fallthru
          _
      $region44: #{orthogonal_forward.1} parent=5 // pred_fallthru
        _
    $region6: #{orthogonal_forward.1} parent=1 // loop_footer
      %s19 = sadd.s32 1, %s15
    $region7: #{orthogonal_forward.1} parent=1 // loop_footer_branch
      %14 = sbr.rel target = $region3
    $region8: #{orthogonal_forward.1} parent=1 // loop_exit
      _
    %325 = vsyncpa [#allocation3], 1
    %s326 = scalar_lea.sflag [#allocation3], 1
    %327 = vsyncpa %s326, 1
    %328 = vsyncpa [#allocation6], 1
    %329 = vsyncpa [#allocation4], 1
    %s330 = scalar_lea.sflag [#allocation4], 1
    %331 = vsyncpa %s330, 1

</llo_original>
